<compile_context>
chip_gen: v7x
topology: tpu7x:2x2x1
jax: 0.10.0
libtpu: 0.0.40
codegen_flags: <defaults>
</compile_context>

<pallas_src>
import math
import numpy as np
import jax
import jax.numpy as jnp
from jax.experimental import pallas as pl
from jax.experimental.pallas import tpu as pltpu

RADIUS = 3               # self.radius = 3 in the module
SIGMA = 5.0              # self.sigema = 5 in the module
KSIZE = 2 * RADIUS + 1   # 7


def gaussian_template() -> np.ndarray:
    """Reproduces GaussianSmoothing.template(): normalized 7x7 Gaussian."""
    side = KSIZE
    result = np.zeros((side, side), dtype=np.float64)
    for i in range(side):
        for j in range(side):
            x = i - RADIUS
            y = j - RADIUS
            res1 = 1.0 / (2.0 * math.pi * SIGMA * SIGMA)
            res2 = math.exp(-(x * x + y * y) / (2.0 * SIGMA * SIGMA))
            result[i, j] = res1 * res2
    return (result / result.sum()).astype(np.float32)


def _gaussian_1d():
    """1-D normalized Gaussian; its outer product equals gaussian_template()
    exactly (the 1/(2*pi*sigma^2) factor cancels in the normalization)."""
    xs = np.arange(-RADIUS, RADIUS + 1, dtype=np.float64)
    g = np.exp(-(xs * xs) / (2.0 * SIGMA * SIGMA))
    g = g / g.sum()
    return tuple(float(v) for v in g)


W1D = _gaussian_1d()   # baked compile-time constants (7 Python floats)


def _smooth_kernel(x_ref, o_ref, xp_ref, tmp_ref):
    # x_ref  : (CB, H, W)      input channel block (VMEM)
    # o_ref  : (CB, H, W)      output channel block (VMEM)
    # xp_ref : (CB, H+6, W+6)  zero-halo padded scratch (VMEM, f32)
    # tmp_ref: (CB, H+6, W)    horizontal-pass intermediate (VMEM, f32)
    CB, H, W = o_ref.shape

    # Build the zero halo in VMEM (no host-side pad / extra HBM pass).
    # Zeroing the whole scratch every step keeps it correct even when the
    # grid axis is split across TensorCores (megacore).
    xp_ref[...] = jnp.zeros_like(xp_ref)
    xp_ref[:, pl.ds(RADIUS, H), pl.ds(RADIUS, W)] = x_ref[...].astype(jnp.float32)

    # Horizontal 7-tap pass (shifts along the lane axis), f32 accumulate.
    acc = W1D[0] * xp_ref[:, :, pl.ds(0, W)]
    for j in range(1, KSIZE):
        acc = acc + W1D[j] * xp_ref[:, :, pl.ds(j, W)]
    tmp_ref[...] = acc

    # Vertical 7-tap pass (shifts along the sublane axis).
    out = W1D[0] * tmp_ref[:, pl.ds(0, H), :]
    for i in range(1, KSIZE):
        out = out + W1D[i] * tmp_ref[:, pl.ds(i, H), :]
    o_ref[...] = out.astype(o_ref.dtype)


def gaussian_smoothing(x: jax.Array) -> jax.Array:
    """x: (N, C, H, W) float32 -> (N, C, H, W) float32."""
    N, C, H, W = x.shape
    NC = N * C
    Hp, Wp = H + 2 * RADIUS, W + 2 * RADIUS

    # Flatten batch*channel (depthwise conv treats every channel independently).
    xf = x.reshape(NC, H, W)

    # Channel-block size: target ~2 MiB of padded input per block so grid-step
    # overhead is amortized, while staying far under v7x's 64 MiB VMEM.
    bytes_per_chan = Hp * Wp * 4
    cb = max(1, min(NC, (1 << 21) // max(1, bytes_per_chan)))
    grid = (pl.cdiv(NC, cb),)

    # Explicit, modest VMEM budget (double-buffered in/out blocks + scratches),
    # capped at 32 MiB so it is valid on v5e / v6e / v7x alike.
    vmem_need = (4 * cb * H * W * 4          # in + out, double buffered
                 + cb * Hp * Wp * 4          # padded scratch
                 + cb * Hp * W * 4)          # horizontal-pass scratch
    vmem_limit = int(min(32 << 20, max(4 << 20, 2 * vmem_need)))

    out = pl.pallas_call(
        _smooth_kernel,
        out_shape=jax.ShapeDtypeStruct((NC, H, W), x.dtype),
        grid=grid,
        in_specs=[pl.BlockSpec((cb, H, W), lambda b: (b, 0, 0))],
        out_specs=pl.BlockSpec((cb, H, W), lambda b: (b, 0, 0)),
        scratch_shapes=[
            pltpu.VMEM((cb, Hp, Wp), jnp.float32),
            pltpu.VMEM((cb, Hp, W), jnp.float32),
        ],
        compiler_params=pltpu.CompilerParams(
            dimension_semantics=("parallel",),
            vmem_limit_bytes=vmem_limit),
    )(xf)
    return out.reshape(N, C, H, W)


if __name__ == "__main__":
    key = jax.random.PRNGKey(0)
    N, C, H, W = 2, 4, 16, 16
    x = jax.random.normal(key, (N, C, H, W), dtype=jnp.float32)

    out = jax.block_until_ready(gaussian_smoothing(x))

    # Reference: depthwise conv with the original (non-separated) 7x7 template,
    # matching F.conv2d(groups=C, padding=3).
    w_ref = jnp.asarray(
        np.broadcast_to(gaussian_template(), (C, 1, KSIZE, KSIZE)).copy())
    ref = jax.lax.conv_general_dilated(
        x, w_ref,
        window_strides=(1, 1),
        padding=((RADIUS, RADIUS), (RADIUS, RADIUS)),
        dimension_numbers=("NCHW", "OIHW", "NCHW"),
        feature_group_count=C)
    ref = jax.block_until_ready(ref)

    assert out.shape == (N, C, H, W)
    assert out.dtype == jnp.float32
    np.testing.assert_allclose(np.asarray(out), np.asarray(ref),
                               rtol=1e-5, atol=1e-5)
    print("KERNEL_OK")
</pallas_src>

<mosaic_0001>
module attributes {stable_mosaic.version = 11 : i64} {
  func.func @_smooth_kernel(%arg0: i32, %arg1: memref<8x16x16xf32, #tpu.memory_space<vmem>>, %arg2: memref<8x16x16xf32, #tpu.memory_space<vmem>>, %arg3: memref<8x22x22xf32, #tpu.memory_space<vmem>>, %arg4: memref<8x22x16xf32, #tpu.memory_space<vmem>>) attributes {dimension_semantics = [#tpu.dimension_semantics<parallel>], iteration_bounds = array<i64: 1>, scalar_prefetch = 0 : i64, scratch_operands = 2 : i64, tpu.core_type = #tpu.core_type<tc>, window_params = [{transform_indices = @transform_0, window_bounds = array<i64: 8, 16, 16>}, {transform_indices = @transform_1, window_bounds = array<i64: 8, 16, 16>}]} {
    %cst = arith.constant 0.000000e+00 : f32
    %0 = vector.broadcast %cst : f32 to vector<8x22x22xf32>
    %c0 = arith.constant 0 : index
    %c0_0 = arith.constant 0 : index
    %c0_1 = arith.constant 0 : index
    %1 = vector.load %arg3[%c0, %c0_0, %c0_1] : memref<8x22x22xf32, #tpu.memory_space<vmem>>, vector<8x22x22xf32>
    tpu.vector_store %arg3[%c0, %c0_0, %c0_1], %0 {strides = array<i32>} : memref<8x22x22xf32, #tpu.memory_space<vmem>>, vector<8x22x22xf32>,
    %c0_2 = arith.constant 0 : index
    %c0_3 = arith.constant 0 : index
    %c0_4 = arith.constant 0 : index
    %2 = vector.load %arg1[%c0_2, %c0_3, %c0_4] : memref<8x16x16xf32, #tpu.memory_space<vmem>>, vector<8x16x16xf32>
    %c0_5 = arith.constant 0 : index
    %c3 = arith.constant 3 : index
    %c3_6 = arith.constant 3 : index
    %3 = vector.load %arg3[%c0_5, %c3, %c3_6] : memref<8x22x22xf32, #tpu.memory_space<vmem>>, vector<8x16x16xf32>
    tpu.vector_store %arg3[%c0_5, %c3, %c3_6], %2 {strides = array<i32>} : memref<8x22x22xf32, #tpu.memory_space<vmem>>, vector<8x16x16xf32>,
    %c0_7 = arith.constant 0 : index
    %c0_8 = arith.constant 0 : index
    %c0_9 = arith.constant 0 : index
    %4 = vector.load %arg3[%c0_7, %c0_8, %c0_9] : memref<8x22x22xf32, #tpu.memory_space<vmem>>, vector<8x22x16xf32>
    %cst_10 = arith.constant 0.128956035 : f32
    %5 = vector.broadcast %cst_10 : f32 to vector<8x22x16xf32>
    %6 = arith.mulf %5, %4 : vector<8x22x16xf32>
    %c0_11 = arith.constant 0 : index
    %c0_12 = arith.constant 0 : index
    %c1 = arith.constant 1 : index
    %7 = vector.load %arg3[%c0_11, %c0_12, %c1] : memref<8x22x22xf32, #tpu.memory_space<vmem>>, vector<8x22x16xf32>
    %cst_13 = arith.constant 0.142518461 : f32
    %8 = vector.broadcast %cst_13 : f32 to vector<8x22x16xf32>
    %9 = arith.mulf %8, %7 : vector<8x22x16xf32>
    %10 = arith.addf %6, %9 : vector<8x22x16xf32>
    %c0_14 = arith.constant 0 : index
    %c0_15 = arith.constant 0 : index
    %c2 = arith.constant 2 : index
    %11 = vector.load %arg3[%c0_14, %c0_15, %c2] : memref<8x22x22xf32, #tpu.memory_space<vmem>>, vector<8x22x16xf32>
    %cst_16 = arith.constant 0.151331306 : f32
    %12 = vector.broadcast %cst_16 : f32 to vector<8x22x16xf32>
    %13 = arith.mulf %12, %11 : vector<8x22x16xf32>
    %14 = arith.addf %10, %13 : vector<8x22x16xf32>
    %c0_17 = arith.constant 0 : index
    %c0_18 = arith.constant 0 : index
    %c3_19 = arith.constant 3 : index
    %15 = vector.load %arg3[%c0_17, %c0_18, %c3_19] : memref<8x22x22xf32, #tpu.memory_space<vmem>>, vector<8x22x16xf32>
    %cst_20 = arith.constant 0.154388398 : f32
    %16 = vector.broadcast %cst_20 : f32 to vector<8x22x16xf32>
    %17 = arith.mulf %16, %15 : vector<8x22x16xf32>
    %18 = arith.addf %14, %17 : vector<8x22x16xf32>
    %c0_21 = arith.constant 0 : index
    %c0_22 = arith.constant 0 : index
    %c4 = arith.constant 4 : index
    %19 = vector.load %arg3[%c0_21, %c0_22, %c4] : memref<8x22x22xf32, #tpu.memory_space<vmem>>, vector<8x22x16xf32>
    %cst_23 = arith.constant 0.151331306 : f32
    %20 = vector.broadcast %cst_23 : f32 to vector<8x22x16xf32>
    %21 = arith.mulf %20, %19 : vector<8x22x16xf32>
    %22 = arith.addf %18, %21 : vector<8x22x16xf32>
    %c0_24 = arith.constant 0 : index
    %c0_25 = arith.constant 0 : index
    %c5 = arith.constant 5 : index
    %23 = vector.load %arg3[%c0_24, %c0_25, %c5] : memref<8x22x22xf32, #tpu.memory_space<vmem>>, vector<8x22x16xf32>
    %cst_26 = arith.constant 0.142518461 : f32
    %24 = vector.broadcast %cst_26 : f32 to vector<8x22x16xf32>
    %25 = arith.mulf %24, %23 : vector<8x22x16xf32>
    %26 = arith.addf %22, %25 : vector<8x22x16xf32>
    %c0_27 = arith.constant 0 : index
    %c0_28 = arith.constant 0 : index
    %c6 = arith.constant 6 : index
    %27 = vector.load %arg3[%c0_27, %c0_28, %c6] : memref<8x22x22xf32, #tpu.memory_space<vmem>>, vector<8x22x16xf32>
    %cst_29 = arith.constant 0.128956035 : f32
    %28 = vector.broadcast %cst_29 : f32 to vector<8x22x16xf32>
    %29 = arith.mulf %28, %27 : vector<8x22x16xf32>
    %30 = arith.addf %26, %29 : vector<8x22x16xf32>
    %c0_30 = arith.constant 0 : index
    %c0_31 = arith.constant 0 : index
    %c0_32 = arith.constant 0 : index
    %31 = vector.load %arg4[%c0_30, %c0_31, %c0_32] : memref<8x22x16xf32, #tpu.memory_space<vmem>>, vector<8x22x16xf32>
    tpu.vector_store %arg4[%c0_30, %c0_31, %c0_32], %30 {strides = array<i32>} : memref<8x22x16xf32, #tpu.memory_space<vmem>>, vector<8x22x16xf32>,
    %c0_33 = arith.constant 0 : index
    %c0_34 = arith.constant 0 : index
    %c0_35 = arith.constant 0 : index
    %32 = vector.load %arg4[%c0_33, %c0_34, %c0_35] : memref<8x22x16xf32, #tpu.memory_space<vmem>>, vector<8x16x16xf32>
    %cst_36 = arith.constant 0.128956035 : f32
    %33 = vector.broadcast %cst_36 : f32 to vector<8x16x16xf32>
    %34 = arith.mulf %33, %32 : vector<8x16x16xf32>
    %c0_37 = arith.constant 0 : index
    %c1_38 = arith.constant 1 : index
    %c0_39 = arith.constant 0 : index
    %35 = vector.load %arg4[%c0_37, %c1_38, %c0_39] : memref<8x22x16xf32, #tpu.memory_space<vmem>>, vector<8x16x16xf32>
    %cst_40 = arith.constant 0.142518461 : f32
    %36 = vector.broadcast %cst_40 : f32 to vector<8x16x16xf32>
    %37 = arith.mulf %36, %35 : vector<8x16x16xf32>
    %38 = arith.addf %34, %37 : vector<8x16x16xf32>
    %c0_41 = arith.constant 0 : index
    %c2_42 = arith.constant 2 : index
    %c0_43 = arith.constant 0 : index
    %39 = vector.load %arg4[%c0_41, %c2_42, %c0_43] : memref<8x22x16xf32, #tpu.memory_space<vmem>>, vector<8x16x16xf32>
    %cst_44 = arith.constant 0.151331306 : f32
    %40 = vector.broadcast %cst_44 : f32 to vector<8x16x16xf32>
    %41 = arith.mulf %40, %39 : vector<8x16x16xf32>
    %42 = arith.addf %38, %41 : vector<8x16x16xf32>
    %c0_45 = arith.constant 0 : index
    %c3_46 = arith.constant 3 : index
    %c0_47 = arith.constant 0 : index
    %43 = vector.load %arg4[%c0_45, %c3_46, %c0_47] : memref<8x22x16xf32, #tpu.memory_space<vmem>>, vector<8x16x16xf32>
    %cst_48 = arith.constant 0.154388398 : f32
    %44 = vector.broadcast %cst_48 : f32 to vector<8x16x16xf32>
    %45 = arith.mulf %44, %43 : vector<8x16x16xf32>
    %46 = arith.addf %42, %45 : vector<8x16x16xf32>
    %c0_49 = arith.constant 0 : index
    %c4_50 = arith.constant 4 : index
    %c0_51 = arith.constant 0 : index
    %47 = vector.load %arg4[%c0_49, %c4_50, %c0_51] : memref<8x22x16xf32, #tpu.memory_space<vmem>>, vector<8x16x16xf32>
    %cst_52 = arith.constant 0.151331306 : f32
    %48 = vector.broadcast %cst_52 : f32 to vector<8x16x16xf32>
    %49 = arith.mulf %48, %47 : vector<8x16x16xf32>
    %50 = arith.addf %46, %49 : vector<8x16x16xf32>
    %c0_53 = arith.constant 0 : index
    %c5_54 = arith.constant 5 : index
    %c0_55 = arith.constant 0 : index
    %51 = vector.load %arg4[%c0_53, %c5_54, %c0_55] : memref<8x22x16xf32, #tpu.memory_space<vmem>>, vector<8x16x16xf32>
    %cst_56 = arith.constant 0.142518461 : f32
    %52 = vector.broadcast %cst_56 : f32 to vector<8x16x16xf32>
    %53 = arith.mulf %52, %51 : vector<8x16x16xf32>
    %54 = arith.addf %50, %53 : vector<8x16x16xf32>
    %c0_57 = arith.constant 0 : index
    %c6_58 = arith.constant 6 : index
    %c0_59 = arith.constant 0 : index
    %55 = vector.load %arg4[%c0_57, %c6_58, %c0_59] : memref<8x22x16xf32, #tpu.memory_space<vmem>>, vector<8x16x16xf32>
    %cst_60 = arith.constant 0.128956035 : f32
    %56 = vector.broadcast %cst_60 : f32 to vector<8x16x16xf32>
    %57 = arith.mulf %56, %55 : vector<8x16x16xf32>
    %58 = arith.addf %54, %57 : vector<8x16x16xf32>
    %c0_61 = arith.constant 0 : index
    %c0_62 = arith.constant 0 : index
    %c0_63 = arith.constant 0 : index
    %59 = vector.load %arg2[%c0_61, %c0_62, %c0_63] : memref<8x16x16xf32, #tpu.memory_space<vmem>>, vector<8x16x16xf32>
    tpu.vector_store %arg2[%c0_61, %c0_62, %c0_63], %58 {strides = array<i32>} : memref<8x16x16xf32, #tpu.memory_space<vmem>>, vector<8x16x16xf32>,
    return
  }
  func.func @transform_0(%arg0: i32) -> (i32, i32, i32) {
    %c0_i32 = arith.constant 0 : i32
    %c0_i32_0 = arith.constant 0 : i32
    %c0_i32_1 = arith.constant 0 : i32
    return %arg0, %c0_i32, %c0_i32_0 : i32, i32, i32
  }
  func.func @transform_1(%arg0: i32) -> (i32, i32, i32) {
    %c0_i32 = arith.constant 0 : i32
    %c0_i32_0 = arith.constant 0 : i32
    %c0_i32_1 = arith.constant 0 : i32
    return %arg0, %c0_i32, %c0_i32_0 : i32, i32, i32
  }
}

</mosaic_0001>

<llo_original>
// kernel: tpu_custom_call.1
$region0: #{tpu_custom_call.1}
  #allocation0 [shape = 'u32[]', space=smem, size = 0x4, offset = 0x4, fixed_abs, tag = 'smem constant byte address 0x4 - core index']
  #allocation1 [shape = 'u32[144,128]{1,0:T(1,128)}', space=vmem, size = 0x12000, scoped, tag = 'internal scratch']
  #allocation2 [shape = 'f32[8,22,22]{2,1,0:T(8,128)}', space=vmem, size = 0x18000, scoped, tag = 'scratch operand']
  #allocation3 [shape = 'f32[8,22,16]{2,1,0:T(8,128)}', space=vmem, size = 0x18000, scoped, tag = 'scratch operand']
  %s0 = inlined_call_operand.hbm [shape: f32[8,16,16], index: 0, kind: input, shape index: {}]
  %s1 = inlined_call_operand.hbm [shape: f32[8,16,16], index: 1, kind: output, shape index: {}]
  %s2 = sld [smem:[#allocation0]]
  $region18: #{tpu_custom_call.1} parent=0
    _
  %s4 = ssub.s32 1, %s2
  %s5 = scalar_select 0, %s4, %s2
  $region1: #{tpu_custom_call.1} parent=0
    #allocation4 [shape = 'u8[65536]{0}', space=vmem, size = 0x10000, scoped, tag = 'input window, operand 0, single buffered']
    #allocation5 [shape = 's32[1]{0}', space=sflag, size = 0x4, scoped, tag = 'scoped memory for tpu_custom_call.1']
    #allocation6 [shape = 's32[1]{0}', space=sflag, size = 0x4, scoped, tag = 'scoped memory for tpu_custom_call.1']
    #allocation7 [shape = 'u8[65536]{0}', space=vmem, size = 0x10000, scoped, tag = 'output window, operand 0, single buffered']
    %6 = vsyncpa [#allocation5], 0
    %7 = vsyncpa [#allocation6], 0
    // Predicated region
    $region2: #{tpu_custom_call.1} parent=1 // pred_check
      _
    $region3: #{tpu_custom_call.1} parent=1 // pred_check_branch
      %9 = sbr.rel (0) target = $region5
    $region4: #{tpu_custom_call.1} parent=1 // pred_region
      %s11 = ssub.s32 2048, 2048
      %12 = vsyncadd [#allocation5], %s11
      %s13 = sshll.u32 [#allocation4], 4
      %s14 = int_to_ptr.vmem [resolvable:$true] %s13
      %19 = dma.hbm_to_vmem [thread:$0]  %s0, 2048, %s14, [#allocation5], 128, 128, 8
    $region5: #{tpu_custom_call.1} parent=1 // pred_fallthru
      _
    // Predicated region
    $region6: #{tpu_custom_call.1} parent=1 // pred_check
      _
    $region7: #{tpu_custom_call.1} parent=1 // pred_check_branch
      %21 = sbr.rel (0) target = $region9
    $region8: #{tpu_custom_call.1} parent=1 // pred_region
      %22 = dma.done [#allocation5], 2048
    $region9: #{tpu_custom_call.1} parent=1 // pred_fallthru
      _
    %vm23 = vcmask 179200
    %24 = vst.msk [vmem:[#allocation2] sm:$0xff] %vm23, 0.0
    %25 = vst.msk [vmem:[#allocation2 + $0x8] sm:$0xff] %vm23, 0.0
    %vm26 = vcmask 177152
    %27 = vst.msk [vmem:[#allocation2 + $0x10] sm:$0x3f] %vm26, 0.0
    %28 = vst.msk [vmem:[#allocation2 + $0x18] sm:$0xff] %vm23, 0.0
    %29 = vst.msk [vmem:[#allocation2 + $0x20] sm:$0xff] %vm23, 0.0
    %30 = vst.msk [vmem:[#allocation2 + $0x28] sm:$0x3f] %vm26, 0.0
    %31 = vst.msk [vmem:[#allocation2 + $0x30] sm:$0xff] %vm23, 0.0
    %32 = vst.msk [vmem:[#allocation2 + $0x38] sm:$0xff] %vm23, 0.0
    %33 = vst.msk [vmem:[#allocation2 + $0x40] sm:$0x3f] %vm26, 0.0
    %34 = vst.msk [vmem:[#allocation2 + $0x48] sm:$0xff] %vm23, 0.0
    %35 = vst.msk [vmem:[#allocation2 + $0x50] sm:$0xff] %vm23, 0.0
    %36 = vst.msk [vmem:[#allocation2 + $0x58] sm:$0x3f] %vm26, 0.0
    %37 = vst.msk [vmem:[#allocation2 + $0x60] sm:$0xff] %vm23, 0.0
    %38 = vst.msk [vmem:[#allocation2 + $0x68] sm:$0xff] %vm23, 0.0
    %39 = vst.msk [vmem:[#allocation2 + $0x70] sm:$0x3f] %vm26, 0.0
    %40 = vst.msk [vmem:[#allocation2 + $0x78] sm:$0xff] %vm23, 0.0
    %41 = vst.msk [vmem:[#allocation2 + $0x80] sm:$0xff] %vm23, 0.0
    %42 = vst.msk [vmem:[#allocation2 + $0x88] sm:$0x3f] %vm26, 0.0
    %43 = vst.msk [vmem:[#allocation2 + $0x90] sm:$0xff] %vm23, 0.0
    %44 = vst.msk [vmem:[#allocation2 + $0x98] sm:$0xff] %vm23, 0.0
    %45 = vst.msk [vmem:[#allocation2 + $0xa0] sm:$0x3f] %vm26, 0.0
    %46 = vst.msk [vmem:[#allocation2 + $0xa8] sm:$0xff] %vm23, 0.0
    %47 = vst.msk [vmem:[#allocation2 + $0xb0] sm:$0xff] %vm23, 0.0
    %48 = vst.msk [vmem:[#allocation2 + $0xb8] sm:$0x3f] %vm26, 0.0
    %v49 = vld [vmem:[#allocation4] sm:$0xff]
    %v50 = vld [vmem:[#allocation4 + $0x8] sm:$0xff]
    %v51 = vld [vmem:[#allocation4 + $0x10] sm:$0xff]
    %v52 = vld [vmem:[#allocation4 + $0x18] sm:$0xff]
    %v53 = vld [vmem:[#allocation4 + $0x20] sm:$0xff]
    %v54 = vld [vmem:[#allocation4 + $0x28] sm:$0xff]
    %v55 = vld [vmem:[#allocation4 + $0x30] sm:$0xff]
    %v56 = vld [vmem:[#allocation4 + $0x38] sm:$0xff]
    %v57 = vld [vmem:[#allocation4 + $0x40] sm:$0xff]
    %v58 = vld [vmem:[#allocation4 + $0x48] sm:$0xff]
    %v59 = vld [vmem:[#allocation4 + $0x50] sm:$0xff]
    %v60 = vld [vmem:[#allocation4 + $0x58] sm:$0xff]
    %v61 = vld [vmem:[#allocation4 + $0x60] sm:$0xff]
    %v62 = vld [vmem:[#allocation4 + $0x68] sm:$0xff]
    %v63 = vld [vmem:[#allocation4 + $0x70] sm:$0xff]
    %v64 = vld [vmem:[#allocation4 + $0x78] sm:$0xff]
    %81 = vrot.lane.b32.xlu0 %v49, 3
    %v82 = vpop.permute.xlu0 %81
    %83 = vrot.lane.b32.xlu0 %v50, 3
    %v84 = vpop.permute.xlu0 %83
    %85 = vrot.lane.b32.xlu0 %v51, 3
    %v86 = vpop.permute.xlu0 %85
    %87 = vrot.lane.b32.xlu0 %v52, 3
    %v88 = vpop.permute.xlu0 %87
    %89 = vrot.lane.b32.xlu0 %v53, 3
    %v90 = vpop.permute.xlu0 %89
    %91 = vrot.lane.b32.xlu0 %v54, 3
    %v92 = vpop.permute.xlu0 %91
    %93 = vrot.lane.b32.xlu0 %v55, 3
    %v94 = vpop.permute.xlu0 %93
    %95 = vrot.lane.b32.xlu0 %v56, 3
    %v96 = vpop.permute.xlu0 %95
    %97 = vrot.lane.b32.xlu0 %v57, 3
    %v98 = vpop.permute.xlu0 %97
    %99 = vrot.lane.b32.xlu0 %v58, 3
    %v100 = vpop.permute.xlu0 %99
    %101 = vrot.lane.b32.xlu0 %v59, 3
    %v102 = vpop.permute.xlu0 %101
    %103 = vrot.lane.b32.xlu0 %v60, 3
    %v104 = vpop.permute.xlu0 %103
    %105 = vrot.lane.b32.xlu0 %v61, 3
    %v106 = vpop.permute.xlu0 %105
    %107 = vrot.lane.b32.xlu0 %v62, 3
    %v108 = vpop.permute.xlu0 %107
    %109 = vrot.lane.b32.xlu0 %v63, 3
    %v110 = vpop.permute.xlu0 %109
    %111 = vrot.lane.b32.xlu0 %v64, 3
    %v112 = vpop.permute.xlu0 %111
    %vm129 = vcmask 154648
    %130 = vst.msk [vmem:[#allocation2 + $0x3] sm:$0xff] %vm129, %v82
    %131 = vst.msk [vmem:[#allocation2 + $0xb] sm:$0xff] %vm129, %v84
    %132 = vst.msk [vmem:[#allocation2 + $0x1b] sm:$0xff] %vm129, %v86
    %133 = vst.msk [vmem:[#allocation2 + $0x23] sm:$0xff] %vm129, %v88
    %134 = vst.msk [vmem:[#allocation2 + $0x33] sm:$0xff] %vm129, %v90
    %135 = vst.msk [vmem:[#allocation2 + $0x3b] sm:$0xff] %vm129, %v92
    %136 = vst.msk [vmem:[#allocation2 + $0x4b] sm:$0xff] %vm129, %v94
    %137 = vst.msk [vmem:[#allocation2 + $0x53] sm:$0xff] %vm129, %v96
    %138 = vst.msk [vmem:[#allocation2 + $0x63] sm:$0xff] %vm129, %v98
    %139 = vst.msk [vmem:[#allocation2 + $0x6b] sm:$0xff] %vm129, %v100
    %140 = vst.msk [vmem:[#allocation2 + $0x7b] sm:$0xff] %vm129, %v102
    %141 = vst.msk [vmem:[#allocation2 + $0x83] sm:$0xff] %vm129, %v104
    %142 = vst.msk [vmem:[#allocation2 + $0x93] sm:$0xff] %vm129, %v106
    %143 = vst.msk [vmem:[#allocation2 + $0x9b] sm:$0xff] %vm129, %v108
    %144 = vst.msk [vmem:[#allocation2 + $0xab] sm:$0xff] %vm129, %v110
    %145 = vst.msk [vmem:[#allocation2 + $0xb3] sm:$0xff] %vm129, %v112
    %v146 = vld [vmem:[#allocation2] sm:$0xff]
    %v147 = vld [vmem:[#allocation2 + $0x8] sm:$0xff]
    %v148 = vld [vmem:[#allocation2 + $0x10] sm:$0x3f]
    %v149 = vld [vmem:[#allocation2 + $0x18] sm:$0xff]
    %v150 = vld [vmem:[#allocation2 + $0x20] sm:$0xff]
    %v151 = vld [vmem:[#allocation2 + $0x28] sm:$0x3f]
    %v152 = vld [vmem:[#allocation2 + $0x30] sm:$0xff]
    %v153 = vld [vmem:[#allocation2 + $0x38] sm:$0xff]
    %v154 = vld [vmem:[#allocation2 + $0x40] sm:$0x3f]
    %v155 = vld [vmem:[#allocation2 + $0x48] sm:$0xff]
    %v156 = vld [vmem:[#allocation2 + $0x50] sm:$0xff]
    %v157 = vld [vmem:[#allocation2 + $0x58] sm:$0x3f]
    %v158 = vld [vmem:[#allocation2 + $0x60] sm:$0xff]
    %v159 = vld [vmem:[#allocation2 + $0x68] sm:$0xff]
    %v160 = vld [vmem:[#allocation2 + $0x70] sm:$0x3f]
    %v161 = vld [vmem:[#allocation2 + $0x78] sm:$0xff]
    %v162 = vld [vmem:[#allocation2 + $0x80] sm:$0xff]
    %v163 = vld [vmem:[#allocation2 + $0x88] sm:$0x3f]
    %v164 = vld [vmem:[#allocation2 + $0x90] sm:$0xff]
    %v165 = vld [vmem:[#allocation2 + $0x98] sm:$0xff]
    %v166 = vld [vmem:[#allocation2 + $0xa0] sm:$0x3f]
    %v167 = vld [vmem:[#allocation2 + $0xa8] sm:$0xff]
    %v168 = vld [vmem:[#allocation2 + $0xb0] sm:$0xff]
    %v169 = vld [vmem:[#allocation2 + $0xb8] sm:$0x3f]
    %v170 = vmul.f32 %v146, 0.12895603
    %v171 = vmul.f32 %v147, 0.12895603
    %v172 = vmul.f32 %v148, 0.12895603
    %v173 = vmul.f32 %v149, 0.12895603
    %v174 = vmul.f32 %v150, 0.12895603
    %v175 = vmul.f32 %v151, 0.12895603
    %v176 = vmul.f32 %v152, 0.12895603
    %v177 = vmul.f32 %v153, 0.12895603
    %v178 = vmul.f32 %v154, 0.12895603
    %v179 = vmul.f32 %v155, 0.12895603
    %v180 = vmul.f32 %v156, 0.12895603
    %v181 = vmul.f32 %v157, 0.12895603
    %v182 = vmul.f32 %v158, 0.12895603
    %v183 = vmul.f32 %v159, 0.12895603
    %v184 = vmul.f32 %v160, 0.12895603
    %v185 = vmul.f32 %v161, 0.12895603
    %v186 = vmul.f32 %v162, 0.12895603
    %v187 = vmul.f32 %v163, 0.12895603
    %v188 = vmul.f32 %v164, 0.12895603
    %v189 = vmul.f32 %v165, 0.12895603
    %v190 = vmul.f32 %v166, 0.12895603
    %v191 = vmul.f32 %v167, 0.12895603
    %v192 = vmul.f32 %v168, 0.12895603
    %v193 = vmul.f32 %v169, 0.12895603
    %v194 = vmul.f32 %v146, 0.14251846
    %v195 = vmul.f32 %v147, 0.14251846
    %v196 = vmul.f32 %v148, 0.14251846
    %v197 = vmul.f32 %v149, 0.14251846
    %v198 = vmul.f32 %v150, 0.14251846
    %v199 = vmul.f32 %v151, 0.14251846
    %v200 = vmul.f32 %v152, 0.14251846
    %v201 = vmul.f32 %v153, 0.14251846
    %v202 = vmul.f32 %v154, 0.14251846
    %v203 = vmul.f32 %v155, 0.14251846
    %v204 = vmul.f32 %v156, 0.14251846
    %v205 = vmul.f32 %v157, 0.14251846
    %v206 = vmul.f32 %v158, 0.14251846
    %v207 = vmul.f32 %v159, 0.14251846
    %v208 = vmul.f32 %v160, 0.14251846
    %v209 = vmul.f32 %v161, 0.14251846
    %v210 = vmul.f32 %v162, 0.14251846
    %v211 = vmul.f32 %v163, 0.14251846
    %v212 = vmul.f32 %v164, 0.14251846
    %v213 = vmul.f32 %v165, 0.14251846
    %v214 = vmul.f32 %v166, 0.14251846
    %v215 = vmul.f32 %v167, 0.14251846
    %v216 = vmul.f32 %v168, 0.14251846
    %v217 = vmul.f32 %v169, 0.14251846
    %242 = vrot.lane.b32.xlu0 %v194, 127
    %v243 = vpop.permute.xlu0 %242
    %244 = vrot.lane.b32.xlu0 %v195, 127
    %v245 = vpop.permute.xlu0 %244
    %246 = vrot.lane.b32.xlu0 %v196, 127
    %v247 = vpop.permute.xlu0 %246
    %248 = vrot.lane.b32.xlu0 %v197, 127
    %v249 = vpop.permute.xlu0 %248
    %250 = vrot.lane.b32.xlu0 %v198, 127
    %v251 = vpop.permute.xlu0 %250
    %252 = vrot.lane.b32.xlu0 %v199, 127
    %v253 = vpop.permute.xlu0 %252
    %254 = vrot.lane.b32.xlu0 %v200, 127
    %v255 = vpop.permute.xlu0 %254
    %256 = vrot.lane.b32.xlu0 %v201, 127
    %v257 = vpop.permute.xlu0 %256
    %258 = vrot.lane.b32.xlu0 %v202, 127
    %v259 = vpop.permute.xlu0 %258
    %260 = vrot.lane.b32.xlu0 %v203, 127
    %v261 = vpop.permute.xlu0 %260
    %262 = vrot.lane.b32.xlu0 %v204, 127
    %v263 = vpop.permute.xlu0 %262
    %264 = vrot.lane.b32.xlu0 %v205, 127
    %v265 = vpop.permute.xlu0 %264
    %266 = vrot.lane.b32.xlu0 %v206, 127
    %v267 = vpop.permute.xlu0 %266
    %268 = vrot.lane.b32.xlu0 %v207, 127
    %v269 = vpop.permute.xlu0 %268
    %270 = vrot.lane.b32.xlu0 %v208, 127
    %v271 = vpop.permute.xlu0 %270
    %272 = vrot.lane.b32.xlu0 %v209, 127
    %v273 = vpop.permute.xlu0 %272
    %274 = vrot.lane.b32.xlu0 %v210, 127
    %v275 = vpop.permute.xlu0 %274
    %276 = vrot.lane.b32.xlu0 %v211, 127
    %v277 = vpop.permute.xlu0 %276
    %278 = vrot.lane.b32.xlu0 %v212, 127
    %v279 = vpop.permute.xlu0 %278
    %280 = vrot.lane.b32.xlu0 %v213, 127
    %v281 = vpop.permute.xlu0 %280
    %282 = vrot.lane.b32.xlu0 %v214, 127
    %v283 = vpop.permute.xlu0 %282
    %284 = vrot.lane.b32.xlu0 %v215, 127
    %v285 = vpop.permute.xlu0 %284
    %286 = vrot.lane.b32.xlu0 %v216, 127
    %v287 = vpop.permute.xlu0 %286
    %288 = vrot.lane.b32.xlu0 %v217, 127
    %v289 = vpop.permute.xlu0 %288
    %v314 = vadd.f32 %v170, %v243
    %v315 = vadd.f32 %v171, %v245
    %v316 = vadd.f32 %v172, %v247
    %v317 = vadd.f32 %v173, %v249
    %v318 = vadd.f32 %v174, %v251
    %v319 = vadd.f32 %v175, %v253
    %v320 = vadd.f32 %v176, %v255
    %v321 = vadd.f32 %v177, %v257
    %v322 = vadd.f32 %v178, %v259
    %v323 = vadd.f32 %v179, %v261
    %v324 = vadd.f32 %v180, %v263
    %v325 = vadd.f32 %v181, %v265
    %v326 = vadd.f32 %v182, %v267
    %v327 = vadd.f32 %v183, %v269
    %v328 = vadd.f32 %v184, %v271
    %v329 = vadd.f32 %v185, %v273
    %v330 = vadd.f32 %v186, %v275
    %v331 = vadd.f32 %v187, %v277
    %v332 = vadd.f32 %v188, %v279
    %v333 = vadd.f32 %v189, %v281
    %v334 = vadd.f32 %v190, %v283
    %v335 = vadd.f32 %v191, %v285
    %v336 = vadd.f32 %v192, %v287
    %v337 = vadd.f32 %v193, %v289
    %v338 = vmul.f32 %v146, 0.1513313
    %v339 = vmul.f32 %v147, 0.1513313
    %v340 = vmul.f32 %v148, 0.1513313
    %v341 = vmul.f32 %v149, 0.1513313
    %v342 = vmul.f32 %v150, 0.1513313
    %v343 = vmul.f32 %v151, 0.1513313
    %v344 = vmul.f32 %v152, 0.1513313
    %v345 = vmul.f32 %v153, 0.1513313
    %v346 = vmul.f32 %v154, 0.1513313
    %v347 = vmul.f32 %v155, 0.1513313
    %v348 = vmul.f32 %v156, 0.1513313
    %v349 = vmul.f32 %v157, 0.1513313
    %v350 = vmul.f32 %v158, 0.1513313
    %v351 = vmul.f32 %v159, 0.1513313
    %v352 = vmul.f32 %v160, 0.1513313
    %v353 = vmul.f32 %v161, 0.1513313
    %v354 = vmul.f32 %v162, 0.1513313
    %v355 = vmul.f32 %v163, 0.1513313
    %v356 = vmul.f32 %v164, 0.1513313
    %v357 = vmul.f32 %v165, 0.1513313
    %v358 = vmul.f32 %v166, 0.1513313
    %v359 = vmul.f32 %v167, 0.1513313
    %v360 = vmul.f32 %v168, 0.1513313
    %v361 = vmul.f32 %v169, 0.1513313
    %386 = vrot.lane.b32.xlu0 %v338, 126
    %v387 = vpop.permute.xlu0 %386
    %388 = vrot.lane.b32.xlu0 %v339, 126
    %v389 = vpop.permute.xlu0 %388
    %390 = vrot.lane.b32.xlu0 %v340, 126
    %v391 = vpop.permute.xlu0 %390
    %392 = vrot.lane.b32.xlu0 %v341, 126
    %v393 = vpop.permute.xlu0 %392
    %394 = vrot.lane.b32.xlu0 %v342, 126
    %v395 = vpop.permute.xlu0 %394
    %396 = vrot.lane.b32.xlu0 %v343, 126
    %v397 = vpop.permute.xlu0 %396
    %398 = vrot.lane.b32.xlu0 %v344, 126
    %v399 = vpop.permute.xlu0 %398
    %400 = vrot.lane.b32.xlu0 %v345, 126
    %v401 = vpop.permute.xlu0 %400
    %402 = vrot.lane.b32.xlu0 %v346, 126
    %v403 = vpop.permute.xlu0 %402
    %404 = vrot.lane.b32.xlu0 %v347, 126
    %v405 = vpop.permute.xlu0 %404
    %406 = vrot.lane.b32.xlu0 %v348, 126
    %v407 = vpop.permute.xlu0 %406
    %408 = vrot.lane.b32.xlu0 %v349, 126
    %v409 = vpop.permute.xlu0 %408
    %410 = vrot.lane.b32.xlu0 %v350, 126
    %v411 = vpop.permute.xlu0 %410
    %412 = vrot.lane.b32.xlu0 %v351, 126
    %v413 = vpop.permute.xlu0 %412
    %414 = vrot.lane.b32.xlu0 %v352, 126
    %v415 = vpop.permute.xlu0 %414
    %416 = vrot.lane.b32.xlu0 %v353, 126
    %v417 = vpop.permute.xlu0 %416
    %418 = vrot.lane.b32.xlu0 %v354, 126
    %v419 = vpop.permute.xlu0 %418
    %420 = vrot.lane.b32.xlu0 %v355, 126
    %v421 = vpop.permute.xlu0 %420
    %422 = vrot.lane.b32.xlu0 %v356, 126
    %v423 = vpop.permute.xlu0 %422
    %424 = vrot.lane.b32.xlu0 %v357, 126
    %v425 = vpop.permute.xlu0 %424
    %426 = vrot.lane.b32.xlu0 %v358, 126
    %v427 = vpop.permute.xlu0 %426
    %428 = vrot.lane.b32.xlu0 %v359, 126
    %v429 = vpop.permute.xlu0 %428
    %430 = vrot.lane.b32.xlu0 %v360, 126
    %v431 = vpop.permute.xlu0 %430
    %432 = vrot.lane.b32.xlu0 %v361, 126
    %v433 = vpop.permute.xlu0 %432
    %v458 = vadd.f32 %v314, %v387
    %v459 = vadd.f32 %v315, %v389
    %v460 = vadd.f32 %v316, %v391
    %v461 = vadd.f32 %v317, %v393
    %v462 = vadd.f32 %v318, %v395
    %v463 = vadd.f32 %v319, %v397
    %v464 = vadd.f32 %v320, %v399
    %v465 = vadd.f32 %v321, %v401
    %v466 = vadd.f32 %v322, %v403
    %v467 = vadd.f32 %v323, %v405
    %v468 = vadd.f32 %v324, %v407
    %v469 = vadd.f32 %v325, %v409
    %v470 = vadd.f32 %v326, %v411
    %v471 = vadd.f32 %v327, %v413
    %v472 = vadd.f32 %v328, %v415
    %v473 = vadd.f32 %v329, %v417
    %v474 = vadd.f32 %v330, %v419
    %v475 = vadd.f32 %v331, %v421
    %v476 = vadd.f32 %v332, %v423
    %v477 = vadd.f32 %v333, %v425
    %v478 = vadd.f32 %v334, %v427
    %v479 = vadd.f32 %v335, %v429
    %v480 = vadd.f32 %v336, %v431
    %v481 = vadd.f32 %v337, %v433
    %v482 = vmul.f32 %v146, 0.1543884
    %v483 = vmul.f32 %v147, 0.1543884
    %v484 = vmul.f32 %v148, 0.1543884
    %v485 = vmul.f32 %v149, 0.1543884
    %v486 = vmul.f32 %v150, 0.1543884
    %v487 = vmul.f32 %v151, 0.1543884
    %v488 = vmul.f32 %v152, 0.1543884
    %v489 = vmul.f32 %v153, 0.1543884
    %v490 = vmul.f32 %v154, 0.1543884
    %v491 = vmul.f32 %v155, 0.1543884
    %v492 = vmul.f32 %v156, 0.1543884
    %v493 = vmul.f32 %v157, 0.1543884
    %v494 = vmul.f32 %v158, 0.1543884
    %v495 = vmul.f32 %v159, 0.1543884
    %v496 = vmul.f32 %v160, 0.1543884
    %v497 = vmul.f32 %v161, 0.1543884
    %v498 = vmul.f32 %v162, 0.1543884
    %v499 = vmul.f32 %v163, 0.1543884
    %v500 = vmul.f32 %v164, 0.1543884
    %v501 = vmul.f32 %v165, 0.1543884
    %v502 = vmul.f32 %v166, 0.1543884
    %v503 = vmul.f32 %v167, 0.1543884
    %v504 = vmul.f32 %v168, 0.1543884
    %v505 = vmul.f32 %v169, 0.1543884
    %530 = vrot.lane.b32.xlu0 %v482, 125
    %v531 = vpop.permute.xlu0 %530
    %532 = vrot.lane.b32.xlu0 %v483, 125
    %v533 = vpop.permute.xlu0 %532
    %534 = vrot.lane.b32.xlu0 %v484, 125
    %v535 = vpop.permute.xlu0 %534
    %536 = vrot.lane.b32.xlu0 %v485, 125
    %v537 = vpop.permute.xlu0 %536
    %538 = vrot.lane.b32.xlu0 %v486, 125
    %v539 = vpop.permute.xlu0 %538
    %540 = vrot.lane.b32.xlu0 %v487, 125
    %v541 = vpop.permute.xlu0 %540
    %542 = vrot.lane.b32.xlu0 %v488, 125
    %v543 = vpop.permute.xlu0 %542
    %544 = vrot.lane.b32.xlu0 %v489, 125
    %v545 = vpop.permute.xlu0 %544
    %546 = vrot.lane.b32.xlu0 %v490, 125
    %v547 = vpop.permute.xlu0 %546
    %548 = vrot.lane.b32.xlu0 %v491, 125
    %v549 = vpop.permute.xlu0 %548
    %550 = vrot.lane.b32.xlu0 %v492, 125
    %v551 = vpop.permute.xlu0 %550
    %552 = vrot.lane.b32.xlu0 %v493, 125
    %v553 = vpop.permute.xlu0 %552
    %554 = vrot.lane.b32.xlu0 %v494, 125
    %v555 = vpop.permute.xlu0 %554
    %556 = vrot.lane.b32.xlu0 %v495, 125
    %v557 = vpop.permute.xlu0 %556
    %558 = vrot.lane.b32.xlu0 %v496, 125
    %v559 = vpop.permute.xlu0 %558
    %560 = vrot.lane.b32.xlu0 %v497, 125
    %v561 = vpop.permute.xlu0 %560
    %562 = vrot.lane.b32.xlu0 %v498, 125
    %v563 = vpop.permute.xlu0 %562
    %564 = vrot.lane.b32.xlu0 %v499, 125
    %v565 = vpop.permute.xlu0 %564
    %566 = vrot.lane.b32.xlu0 %v500, 125
    %v567 = vpop.permute.xlu0 %566
    %568 = vrot.lane.b32.xlu0 %v501, 125
    %v569 = vpop.permute.xlu0 %568
    %570 = vrot.lane.b32.xlu0 %v502, 125
    %v571 = vpop.permute.xlu0 %570
    %572 = vrot.lane.b32.xlu0 %v503, 125
    %v573 = vpop.permute.xlu0 %572
    %574 = vrot.lane.b32.xlu0 %v504, 125
    %v575 = vpop.permute.xlu0 %574
    %576 = vrot.lane.b32.xlu0 %v505, 125
    %v577 = vpop.permute.xlu0 %576
    %v602 = vadd.f32 %v458, %v531
    %v603 = vadd.f32 %v459, %v533
    %v604 = vadd.f32 %v460, %v535
    %v605 = vadd.f32 %v461, %v537
    %v606 = vadd.f32 %v462, %v539
    %v607 = vadd.f32 %v463, %v541
    %v608 = vadd.f32 %v464, %v543
    %v609 = vadd.f32 %v465, %v545
    %v610 = vadd.f32 %v466, %v547
    %v611 = vadd.f32 %v467, %v549
    %v612 = vadd.f32 %v468, %v551
    %v613 = vadd.f32 %v469, %v553
    %v614 = vadd.f32 %v470, %v555
    %v615 = vadd.f32 %v471, %v557
    %v616 = vadd.f32 %v472, %v559
    %v617 = vadd.f32 %v473, %v561
    %v618 = vadd.f32 %v474, %v563
    %v619 = vadd.f32 %v475, %v565
    %v620 = vadd.f32 %v476, %v567
    %v621 = vadd.f32 %v477, %v569
    %v622 = vadd.f32 %v478, %v571
    %v623 = vadd.f32 %v479, %v573
    %v624 = vadd.f32 %v480, %v575
    %v625 = vadd.f32 %v481, %v577
    %626 = vrot.lane.b32.xlu0 %v338, 124
    %v627 = vpop.permute.xlu0 %626
    %628 = vrot.lane.b32.xlu0 %v339, 124
    %v629 = vpop.permute.xlu0 %628
    %630 = vrot.lane.b32.xlu0 %v340, 124
    %v631 = vpop.permute.xlu0 %630
    %632 = vrot.lane.b32.xlu0 %v341, 124
    %v633 = vpop.permute.xlu0 %632
    %634 = vrot.lane.b32.xlu0 %v342, 124
    %v635 = vpop.permute.xlu0 %634
    %636 = vrot.lane.b32.xlu0 %v343, 124
    %v637 = vpop.permute.xlu0 %636
    %638 = vrot.lane.b32.xlu0 %v344, 124
    %v639 = vpop.permute.xlu0 %638
    %640 = vrot.lane.b32.xlu0 %v345, 124
    %v641 = vpop.permute.xlu0 %640
    %642 = vrot.lane.b32.xlu0 %v346, 124
    %v643 = vpop.permute.xlu0 %642
    %644 = vrot.lane.b32.xlu0 %v347, 124
    %v645 = vpop.permute.xlu0 %644
    %646 = vrot.lane.b32.xlu0 %v348, 124
    %v647 = vpop.permute.xlu0 %646
    %648 = vrot.lane.b32.xlu0 %v349, 124
    %v649 = vpop.permute.xlu0 %648
    %650 = vrot.lane.b32.xlu0 %v350, 124
    %v651 = vpop.permute.xlu0 %650
    %652 = vrot.lane.b32.xlu0 %v351, 124
    %v653 = vpop.permute.xlu0 %652
    %654 = vrot.lane.b32.xlu0 %v352, 124
    %v655 = vpop.permute.xlu0 %654
    %656 = vrot.lane.b32.xlu0 %v353, 124
    %v657 = vpop.permute.xlu0 %656
    %658 = vrot.lane.b32.xlu0 %v354, 124
    %v659 = vpop.permute.xlu0 %658
    %660 = vrot.lane.b32.xlu0 %v355, 124
    %v661 = vpop.permute.xlu0 %660
    %662 = vrot.lane.b32.xlu0 %v356, 124
    %v663 = vpop.permute.xlu0 %662
    %664 = vrot.lane.b32.xlu0 %v357, 124
    %v665 = vpop.permute.xlu0 %664
    %666 = vrot.lane.b32.xlu0 %v358, 124
    %v667 = vpop.permute.xlu0 %666
    %668 = vrot.lane.b32.xlu0 %v359, 124
    %v669 = vpop.permute.xlu0 %668
    %670 = vrot.lane.b32.xlu0 %v360, 124
    %v671 = vpop.permute.xlu0 %670
    %672 = vrot.lane.b32.xlu0 %v361, 124
    %v673 = vpop.permute.xlu0 %672
    %v698 = vadd.f32 %v602, %v627
    %v699 = vadd.f32 %v603, %v629
    %v700 = vadd.f32 %v604, %v631
    %v701 = vadd.f32 %v605, %v633
    %v702 = vadd.f32 %v606, %v635
    %v703 = vadd.f32 %v607, %v637
    %v704 = vadd.f32 %v608, %v639
    %v705 = vadd.f32 %v609, %v641
    %v706 = vadd.f32 %v610, %v643
    %v707 = vadd.f32 %v611, %v645
    %v708 = vadd.f32 %v612, %v647
    %v709 = vadd.f32 %v613, %v649
    %v710 = vadd.f32 %v614, %v651
    %v711 = vadd.f32 %v615, %v653
    %v712 = vadd.f32 %v616, %v655
    %v713 = vadd.f32 %v617, %v657
    %v714 = vadd.f32 %v618, %v659
    %v715 = vadd.f32 %v619, %v661
    %v716 = vadd.f32 %v620, %v663
    %v717 = vadd.f32 %v621, %v665
    %v718 = vadd.f32 %v622, %v667
    %v719 = vadd.f32 %v623, %v669
    %v720 = vadd.f32 %v624, %v671
    %v721 = vadd.f32 %v625, %v673
    %722 = vrot.lane.b32.xlu0 %v194, 123
    %v723 = vpop.permute.xlu0 %722
    %724 = vrot.lane.b32.xlu0 %v195, 123
    %v725 = vpop.permute.xlu0 %724
    %726 = vrot.lane.b32.xlu0 %v196, 123
    %v727 = vpop.permute.xlu0 %726
    %728 = vrot.lane.b32.xlu0 %v197, 123
    %v729 = vpop.permute.xlu0 %728
    %730 = vrot.lane.b32.xlu0 %v198, 123
    %v731 = vpop.permute.xlu0 %730
    %732 = vrot.lane.b32.xlu0 %v199, 123
    %v733 = vpop.permute.xlu0 %732
    %734 = vrot.lane.b32.xlu0 %v200, 123
    %v735 = vpop.permute.xlu0 %734
    %736 = vrot.lane.b32.xlu0 %v201, 123
    %v737 = vpop.permute.xlu0 %736
    %738 = vrot.lane.b32.xlu0 %v202, 123
    %v739 = vpop.permute.xlu0 %738
    %740 = vrot.lane.b32.xlu0 %v203, 123
    %v741 = vpop.permute.xlu0 %740
    %742 = vrot.lane.b32.xlu0 %v204, 123
    %v743 = vpop.permute.xlu0 %742
    %744 = vrot.lane.b32.xlu0 %v205, 123
    %v745 = vpop.permute.xlu0 %744
    %746 = vrot.lane.b32.xlu0 %v206, 123
    %v747 = vpop.permute.xlu0 %746
    %748 = vrot.lane.b32.xlu0 %v207, 123
    %v749 = vpop.permute.xlu0 %748
    %750 = vrot.lane.b32.xlu0 %v208, 123
    %v751 = vpop.permute.xlu0 %750
    %752 = vrot.lane.b32.xlu0 %v209, 123
    %v753 = vpop.permute.xlu0 %752
    %754 = vrot.lane.b32.xlu0 %v210, 123
    %v755 = vpop.permute.xlu0 %754
    %756 = vrot.lane.b32.xlu0 %v211, 123
    %v757 = vpop.permute.xlu0 %756
    %758 = vrot.lane.b32.xlu0 %v212, 123
    %v759 = vpop.permute.xlu0 %758
    %760 = vrot.lane.b32.xlu0 %v213, 123
    %v761 = vpop.permute.xlu0 %760
    %762 = vrot.lane.b32.xlu0 %v214, 123
    %v763 = vpop.permute.xlu0 %762
    %764 = vrot.lane.b32.xlu0 %v215, 123
    %v765 = vpop.permute.xlu0 %764
    %766 = vrot.lane.b32.xlu0 %v216, 123
    %v767 = vpop.permute.xlu0 %766
    %768 = vrot.lane.b32.xlu0 %v217, 123
    %v769 = vpop.permute.xlu0 %768
    %v794 = vadd.f32 %v698, %v723
    %v795 = vadd.f32 %v699, %v725
    %v796 = vadd.f32 %v700, %v727
    %v797 = vadd.f32 %v701, %v729
    %v798 = vadd.f32 %v702, %v731
    %v799 = vadd.f32 %v703, %v733
    %v800 = vadd.f32 %v704, %v735
    %v801 = vadd.f32 %v705, %v737
    %v802 = vadd.f32 %v706, %v739
    %v803 = vadd.f32 %v707, %v741
    %v804 = vadd.f32 %v708, %v743
    %v805 = vadd.f32 %v709, %v745
    %v806 = vadd.f32 %v710, %v747
    %v807 = vadd.f32 %v711, %v749
    %v808 = vadd.f32 %v712, %v751
    %v809 = vadd.f32 %v713, %v753
    %v810 = vadd.f32 %v714, %v755
    %v811 = vadd.f32 %v715, %v757
    %v812 = vadd.f32 %v716, %v759
    %v813 = vadd.f32 %v717, %v761
    %v814 = vadd.f32 %v718, %v763
    %v815 = vadd.f32 %v719, %v765
    %v816 = vadd.f32 %v720, %v767
    %v817 = vadd.f32 %v721, %v769
    %842 = vrot.lane.b32.xlu0 %v170, 122
    %v843 = vpop.permute.xlu0 %842
    %844 = vrot.lane.b32.xlu0 %v171, 122
    %v845 = vpop.permute.xlu0 %844
    %846 = vrot.lane.b32.xlu0 %v172, 122
    %v847 = vpop.permute.xlu0 %846
    %848 = vrot.lane.b32.xlu0 %v173, 122
    %v849 = vpop.permute.xlu0 %848
    %850 = vrot.lane.b32.xlu0 %v174, 122
    %v851 = vpop.permute.xlu0 %850
    %852 = vrot.lane.b32.xlu0 %v175, 122
    %v853 = vpop.permute.xlu0 %852
    %854 = vrot.lane.b32.xlu0 %v176, 122
    %v855 = vpop.permute.xlu0 %854
    %856 = vrot.lane.b32.xlu0 %v177, 122
    %v857 = vpop.permute.xlu0 %856
    %858 = vrot.lane.b32.xlu0 %v178, 122
    %v859 = vpop.permute.xlu0 %858
    %860 = vrot.lane.b32.xlu0 %v179, 122
    %v861 = vpop.permute.xlu0 %860
    %862 = vrot.lane.b32.xlu0 %v180, 122
    %v863 = vpop.permute.xlu0 %862
    %864 = vrot.lane.b32.xlu0 %v181, 122
    %v865 = vpop.permute.xlu0 %864
    %866 = vrot.lane.b32.xlu0 %v182, 122
    %v867 = vpop.permute.xlu0 %866
    %868 = vrot.lane.b32.xlu0 %v183, 122
    %v869 = vpop.permute.xlu0 %868
    %870 = vrot.lane.b32.xlu0 %v184, 122
    %v871 = vpop.permute.xlu0 %870
    %872 = vrot.lane.b32.xlu0 %v185, 122
    %v873 = vpop.permute.xlu0 %872
    %874 = vrot.lane.b32.xlu0 %v186, 122
    %v875 = vpop.permute.xlu0 %874
    %876 = vrot.lane.b32.xlu0 %v187, 122
    %v877 = vpop.permute.xlu0 %876
    %878 = vrot.lane.b32.xlu0 %v188, 122
    %v879 = vpop.permute.xlu0 %878
    %880 = vrot.lane.b32.xlu0 %v189, 122
    %v881 = vpop.permute.xlu0 %880
    %882 = vrot.lane.b32.xlu0 %v190, 122
    %v883 = vpop.permute.xlu0 %882
    %884 = vrot.lane.b32.xlu0 %v191, 122
    %v885 = vpop.permute.xlu0 %884
    %886 = vrot.lane.b32.xlu0 %v192, 122
    %v887 = vpop.permute.xlu0 %886
    %888 = vrot.lane.b32.xlu0 %v193, 122
    %v889 = vpop.permute.xlu0 %888
    %v914 = vadd.f32 %v794, %v843
    %v915 = vadd.f32 %v795, %v845
    %v916 = vadd.f32 %v796, %v847
    %v917 = vadd.f32 %v797, %v849
    %v918 = vadd.f32 %v798, %v851
    %v919 = vadd.f32 %v799, %v853
    %v920 = vadd.f32 %v800, %v855
    %v921 = vadd.f32 %v801, %v857
    %v922 = vadd.f32 %v802, %v859
    %v923 = vadd.f32 %v803, %v861
    %v924 = vadd.f32 %v804, %v863
    %v925 = vadd.f32 %v805, %v865
    %v926 = vadd.f32 %v806, %v867
    %v927 = vadd.f32 %v807, %v869
    %v928 = vadd.f32 %v808, %v871
    %v929 = vadd.f32 %v809, %v873
    %v930 = vadd.f32 %v810, %v875
    %v931 = vadd.f32 %v811, %v877
    %v932 = vadd.f32 %v812, %v879
    %v933 = vadd.f32 %v813, %v881
    %v934 = vadd.f32 %v814, %v883
    %v935 = vadd.f32 %v815, %v885
    %v936 = vadd.f32 %v816, %v887
    %v937 = vadd.f32 %v817, %v889
    %vm938 = vcmask 130048
    %939 = vst.msk [vmem:[#allocation3] sm:$0xff] %vm938, %v914
    %940 = vst.msk [vmem:[#allocation3 + $0x8] sm:$0xff] %vm938, %v915
    %vm941 = vcmask 128000
    %942 = vst.msk [vmem:[#allocation3 + $0x10] sm:$0x3f] %vm941, %v916
    %943 = vst.msk [vmem:[#allocation3 + $0x18] sm:$0xff] %vm938, %v917
    %944 = vst.msk [vmem:[#allocation3 + $0x20] sm:$0xff] %vm938, %v918
    %945 = vst.msk [vmem:[#allocation3 + $0x28] sm:$0x3f] %vm941, %v919
    %946 = vst.msk [vmem:[#allocation3 + $0x30] sm:$0xff] %vm938, %v920
    %947 = vst.msk [vmem:[#allocation3 + $0x38] sm:$0xff] %vm938, %v921
    %948 = vst.msk [vmem:[#allocation3 + $0x40] sm:$0x3f] %vm941, %v922
    %949 = vst.msk [vmem:[#allocation3 + $0x48] sm:$0xff] %vm938, %v923
    %950 = vst.msk [vmem:[#allocation3 + $0x50] sm:$0xff] %vm938, %v924
    %951 = vst.msk [vmem:[#allocation3 + $0x58] sm:$0x3f] %vm941, %v925
    %952 = vst.msk [vmem:[#allocation3 + $0x60] sm:$0xff] %vm938, %v926
    %953 = vst.msk [vmem:[#allocation3 + $0x68] sm:$0xff] %vm938, %v927
    %954 = vst.msk [vmem:[#allocation3 + $0x70] sm:$0x3f] %vm941, %v928
    %955 = vst.msk [vmem:[#allocation3 + $0x78] sm:$0xff] %vm938, %v929
    %956 = vst.msk [vmem:[#allocation3 + $0x80] sm:$0xff] %vm938, %v930
    %957 = vst.msk [vmem:[#allocation3 + $0x88] sm:$0x3f] %vm941, %v931
    %958 = vst.msk [vmem:[#allocation3 + $0x90] sm:$0xff] %vm938, %v932
    %959 = vst.msk [vmem:[#allocation3 + $0x98] sm:$0xff] %vm938, %v933
    %960 = vst.msk [vmem:[#allocation3 + $0xa0] sm:$0x3f] %vm941, %v934
    %961 = vst.msk [vmem:[#allocation3 + $0xa8] sm:$0xff] %vm938, %v935
    %962 = vst.msk [vmem:[#allocation3 + $0xb0] sm:$0xff] %vm938, %v936
    %963 = vst.msk [vmem:[#allocation3 + $0xb8] sm:$0x3f] %vm941, %v937
    %v964 = vld [vmem:[#allocation3] sm:$0xff]
    %v965 = vld [vmem:[#allocation3 + $0x8] sm:$0xff]
    %v966 = vld [vmem:[#allocation3 + $0x18] sm:$0xff]
    %v967 = vld [vmem:[#allocation3 + $0x20] sm:$0xff]
    %v968 = vld [vmem:[#allocation3 + $0x30] sm:$0xff]
    %v969 = vld [vmem:[#allocation3 + $0x38] sm:$0xff]
    %v970 = vld [vmem:[#allocation3 + $0x48] sm:$0xff]
    %v971 = vld [vmem:[#allocation3 + $0x50] sm:$0xff]
    %v972 = vld [vmem:[#allocation3 + $0x60] sm:$0xff]
    %v973 = vld [vmem:[#allocation3 + $0x68] sm:$0xff]
    %v974 = vld [vmem:[#allocation3 + $0x78] sm:$0xff]
    %v975 = vld [vmem:[#allocation3 + $0x80] sm:$0xff]
    %v976 = vld [vmem:[#allocation3 + $0x90] sm:$0xff]
    %v977 = vld [vmem:[#allocation3 + $0x98] sm:$0xff]
    %v978 = vld [vmem:[#allocation3 + $0xa8] sm:$0xff]
    %v979 = vld [vmem:[#allocation3 + $0xb0] sm:$0xff]
    %v980 = vmul.f32 %v964, 0.12895603
    %v981 = vmul.f32 %v965, 0.12895603
    %v982 = vmul.f32 %v966, 0.12895603
    %v983 = vmul.f32 %v967, 0.12895603
    %v984 = vmul.f32 %v968, 0.12895603
    %v985 = vmul.f32 %v969, 0.12895603
    %v986 = vmul.f32 %v970, 0.12895603
    %v987 = vmul.f32 %v971, 0.12895603
    %v988 = vmul.f32 %v972, 0.12895603
    %v989 = vmul.f32 %v973, 0.12895603
    %v990 = vmul.f32 %v974, 0.12895603
    %v991 = vmul.f32 %v975, 0.12895603
    %v992 = vmul.f32 %v976, 0.12895603
    %v993 = vmul.f32 %v977, 0.12895603
    %v994 = vmul.f32 %v978, 0.12895603
    %v995 = vmul.f32 %v979, 0.12895603
    %v996 = vld [vmem:[#allocation3 + $0x1] sm:$0xff]
    %v997 = vld [vmem:[#allocation3 + $0x9] sm:$0xff]
    %v998 = vld [vmem:[#allocation3 + $0x19] sm:$0xff]
    %v999 = vld [vmem:[#allocation3 + $0x21] sm:$0xff]
    %v1000 = vld [vmem:[#allocation3 + $0x31] sm:$0xff]
    %v1001 = vld [vmem:[#allocation3 + $0x39] sm:$0xff]
    %v1002 = vld [vmem:[#allocation3 + $0x49] sm:$0xff]
    %v1003 = vld [vmem:[#allocation3 + $0x51] sm:$0xff]
    %v1004 = vld [vmem:[#allocation3 + $0x61] sm:$0xff]
    %v1005 = vld [vmem:[#allocation3 + $0x69] sm:$0xff]
    %v1006 = vld [vmem:[#allocation3 + $0x79] sm:$0xff]
    %v1007 = vld [vmem:[#allocation3 + $0x81] sm:$0xff]
    %v1008 = vld [vmem:[#allocation3 + $0x91] sm:$0xff]
    %v1009 = vld [vmem:[#allocation3 + $0x99] sm:$0xff]
    %v1010 = vld [vmem:[#allocation3 + $0xa9] sm:$0xff]
    %v1011 = vld [vmem:[#allocation3 + $0xb1] sm:$0xff]
    %v1012 = vmul.f32 %v996, 0.14251846
    %v1013 = vmul.f32 %v997, 0.14251846
    %v1014 = vmul.f32 %v998, 0.14251846
    %v1015 = vmul.f32 %v999, 0.14251846
    %v1016 = vmul.f32 %v1000, 0.14251846
    %v1017 = vmul.f32 %v1001, 0.14251846
    %v1018 = vmul.f32 %v1002, 0.14251846
    %v1019 = vmul.f32 %v1003, 0.14251846
    %v1020 = vmul.f32 %v1004, 0.14251846
    %v1021 = vmul.f32 %v1005, 0.14251846
    %v1022 = vmul.f32 %v1006, 0.14251846
    %v1023 = vmul.f32 %v1007, 0.14251846
    %v1024 = vmul.f32 %v1008, 0.14251846
    %v1025 = vmul.f32 %v1009, 0.14251846
    %v1026 = vmul.f32 %v1010, 0.14251846
    %v1027 = vmul.f32 %v1011, 0.14251846
    %v1028 = vadd.f32 %v980, %v1012
    %v1029 = vadd.f32 %v981, %v1013
    %v1030 = vadd.f32 %v982, %v1014
    %v1031 = vadd.f32 %v983, %v1015
    %v1032 = vadd.f32 %v984, %v1016
    %v1033 = vadd.f32 %v985, %v1017
    %v1034 = vadd.f32 %v986, %v1018
    %v1035 = vadd.f32 %v987, %v1019
    %v1036 = vadd.f32 %v988, %v1020
    %v1037 = vadd.f32 %v989, %v1021
    %v1038 = vadd.f32 %v990, %v1022
    %v1039 = vadd.f32 %v991, %v1023
    %v1040 = vadd.f32 %v992, %v1024
    %v1041 = vadd.f32 %v993, %v1025
    %v1042 = vadd.f32 %v994, %v1026
    %v1043 = vadd.f32 %v995, %v1027
    %v1044 = vld [vmem:[#allocation3 + $0x2] sm:$0xff]
    %v1045 = vld [vmem:[#allocation3 + $0xa] sm:$0xff]
    %v1046 = vld [vmem:[#allocation3 + $0x1a] sm:$0xff]
    %v1047 = vld [vmem:[#allocation3 + $0x22] sm:$0xff]
    %v1048 = vld [vmem:[#allocation3 + $0x32] sm:$0xff]
    %v1049 = vld [vmem:[#allocation3 + $0x3a] sm:$0xff]
    %v1050 = vld [vmem:[#allocation3 + $0x4a] sm:$0xff]
    %v1051 = vld [vmem:[#allocation3 + $0x52] sm:$0xff]
    %v1052 = vld [vmem:[#allocation3 + $0x62] sm:$0xff]
    %v1053 = vld [vmem:[#allocation3 + $0x6a] sm:$0xff]
    %v1054 = vld [vmem:[#allocation3 + $0x7a] sm:$0xff]
    %v1055 = vld [vmem:[#allocation3 + $0x82] sm:$0xff]
    %v1056 = vld [vmem:[#allocation3 + $0x92] sm:$0xff]
    %v1057 = vld [vmem:[#allocation3 + $0x9a] sm:$0xff]
    %v1058 = vld [vmem:[#allocation3 + $0xaa] sm:$0xff]
    %v1059 = vld [vmem:[#allocation3 + $0xb2] sm:$0xff]
    %v1060 = vmul.f32 %v1044, 0.1513313
    %v1061 = vmul.f32 %v1045, 0.1513313
    %v1062 = vmul.f32 %v1046, 0.1513313
    %v1063 = vmul.f32 %v1047, 0.1513313
    %v1064 = vmul.f32 %v1048, 0.1513313
    %v1065 = vmul.f32 %v1049, 0.1513313
    %v1066 = vmul.f32 %v1050, 0.1513313
    %v1067 = vmul.f32 %v1051, 0.1513313
    %v1068 = vmul.f32 %v1052, 0.1513313
    %v1069 = vmul.f32 %v1053, 0.1513313
    %v1070 = vmul.f32 %v1054, 0.1513313
    %v1071 = vmul.f32 %v1055, 0.1513313
    %v1072 = vmul.f32 %v1056, 0.1513313
    %v1073 = vmul.f32 %v1057, 0.1513313
    %v1074 = vmul.f32 %v1058, 0.1513313
    %v1075 = vmul.f32 %v1059, 0.1513313
    %v1076 = vadd.f32 %v1028, %v1060
    %v1077 = vadd.f32 %v1029, %v1061
    %v1078 = vadd.f32 %v1030, %v1062
    %v1079 = vadd.f32 %v1031, %v1063
    %v1080 = vadd.f32 %v1032, %v1064
    %v1081 = vadd.f32 %v1033, %v1065
    %v1082 = vadd.f32 %v1034, %v1066
    %v1083 = vadd.f32 %v1035, %v1067
    %v1084 = vadd.f32 %v1036, %v1068
    %v1085 = vadd.f32 %v1037, %v1069
    %v1086 = vadd.f32 %v1038, %v1070
    %v1087 = vadd.f32 %v1039, %v1071
    %v1088 = vadd.f32 %v1040, %v1072
    %v1089 = vadd.f32 %v1041, %v1073
    %v1090 = vadd.f32 %v1042, %v1074
    %v1091 = vadd.f32 %v1043, %v1075
    %v1092 = vld [vmem:[#allocation3 + $0x3] sm:$0xff]
    %v1093 = vld [vmem:[#allocation3 + $0xb] sm:$0xff]
    %v1094 = vld [vmem:[#allocation3 + $0x1b] sm:$0xff]
    %v1095 = vld [vmem:[#allocation3 + $0x23] sm:$0xff]
    %v1096 = vld [vmem:[#allocation3 + $0x33] sm:$0xff]
    %v1097 = vld [vmem:[#allocation3 + $0x3b] sm:$0xff]
    %v1098 = vld [vmem:[#allocation3 + $0x4b] sm:$0xff]
    %v1099 = vld [vmem:[#allocation3 + $0x53] sm:$0xff]
    %v1100 = vld [vmem:[#allocation3 + $0x63] sm:$0xff]
    %v1101 = vld [vmem:[#allocation3 + $0x6b] sm:$0xff]
    %v1102 = vld [vmem:[#allocation3 + $0x7b] sm:$0xff]
    %v1103 = vld [vmem:[#allocation3 + $0x83] sm:$0xff]
    %v1104 = vld [vmem:[#allocation3 + $0x93] sm:$0xff]
    %v1105 = vld [vmem:[#allocation3 + $0x9b] sm:$0xff]
    %v1106 = vld [vmem:[#allocation3 + $0xab] sm:$0xff]
    %v1107 = vld [vmem:[#allocation3 + $0xb3] sm:$0xff]
    %v1108 = vmul.f32 %v1092, 0.1543884
    %v1109 = vmul.f32 %v1093, 0.1543884
    %v1110 = vmul.f32 %v1094, 0.1543884
    %v1111 = vmul.f32 %v1095, 0.1543884
    %v1112 = vmul.f32 %v1096, 0.1543884
    %v1113 = vmul.f32 %v1097, 0.1543884
    %v1114 = vmul.f32 %v1098, 0.1543884
    %v1115 = vmul.f32 %v1099, 0.1543884
    %v1116 = vmul.f32 %v1100, 0.1543884
    %v1117 = vmul.f32 %v1101, 0.1543884
    %v1118 = vmul.f32 %v1102, 0.1543884
    %v1119 = vmul.f32 %v1103, 0.1543884
    %v1120 = vmul.f32 %v1104, 0.1543884
    %v1121 = vmul.f32 %v1105, 0.1543884
    %v1122 = vmul.f32 %v1106, 0.1543884
    %v1123 = vmul.f32 %v1107, 0.1543884
    %v1124 = vadd.f32 %v1076, %v1108
    %v1125 = vadd.f32 %v1077, %v1109
    %v1126 = vadd.f32 %v1078, %v1110
    %v1127 = vadd.f32 %v1079, %v1111
    %v1128 = vadd.f32 %v1080, %v1112
    %v1129 = vadd.f32 %v1081, %v1113
    %v1130 = vadd.f32 %v1082, %v1114
    %v1131 = vadd.f32 %v1083, %v1115
    %v1132 = vadd.f32 %v1084, %v1116
    %v1133 = vadd.f32 %v1085, %v1117
    %v1134 = vadd.f32 %v1086, %v1118
    %v1135 = vadd.f32 %v1087, %v1119
    %v1136 = vadd.f32 %v1088, %v1120
    %v1137 = vadd.f32 %v1089, %v1121
    %v1138 = vadd.f32 %v1090, %v1122
    %v1139 = vadd.f32 %v1091, %v1123
    %v1140 = vld [vmem:[#allocation3 + $0x4] sm:$0xff]
    %v1141 = vld [vmem:[#allocation3 + $0xc] sm:$0xff]
    %v1142 = vld [vmem:[#allocation3 + $0x1c] sm:$0xff]
    %v1143 = vld [vmem:[#allocation3 + $0x24] sm:$0xff]
    %v1144 = vld [vmem:[#allocation3 + $0x34] sm:$0xff]
    %v1145 = vld [vmem:[#allocation3 + $0x3c] sm:$0xff]
    %v1146 = vld [vmem:[#allocation3 + $0x4c] sm:$0xff]
    %v1147 = vld [vmem:[#allocation3 + $0x54] sm:$0xff]
    %v1148 = vld [vmem:[#allocation3 + $0x64] sm:$0xff]
    %v1149 = vld [vmem:[#allocation3 + $0x6c] sm:$0xff]
    %v1150 = vld [vmem:[#allocation3 + $0x7c] sm:$0xff]
    %v1151 = vld [vmem:[#allocation3 + $0x84] sm:$0xff]
    %v1152 = vld [vmem:[#allocation3 + $0x94] sm:$0xff]
    %v1153 = vld [vmem:[#allocation3 + $0x9c] sm:$0xff]
    %v1154 = vld [vmem:[#allocation3 + $0xac] sm:$0xff]
    %v1155 = vld [vmem:[#allocation3 + $0xb4] sm:$0xff]
    %v1156 = vmul.f32 %v1140, 0.1513313
    %v1157 = vmul.f32 %v1141, 0.1513313
    %v1158 = vmul.f32 %v1142, 0.1513313
    %v1159 = vmul.f32 %v1143, 0.1513313
    %v1160 = vmul.f32 %v1144, 0.1513313
    %v1161 = vmul.f32 %v1145, 0.1513313
    %v1162 = vmul.f32 %v1146, 0.1513313
    %v1163 = vmul.f32 %v1147, 0.1513313
    %v1164 = vmul.f32 %v1148, 0.1513313
    %v1165 = vmul.f32 %v1149, 0.1513313
    %v1166 = vmul.f32 %v1150, 0.1513313
    %v1167 = vmul.f32 %v1151, 0.1513313
    %v1168 = vmul.f32 %v1152, 0.1513313
    %v1169 = vmul.f32 %v1153, 0.1513313
    %v1170 = vmul.f32 %v1154, 0.1513313
    %v1171 = vmul.f32 %v1155, 0.1513313
    %v1172 = vadd.f32 %v1124, %v1156
    %v1173 = vadd.f32 %v1125, %v1157
    %v1174 = vadd.f32 %v1126, %v1158
    %v1175 = vadd.f32 %v1127, %v1159
    %v1176 = vadd.f32 %v1128, %v1160
    %v1177 = vadd.f32 %v1129, %v1161
    %v1178 = vadd.f32 %v1130, %v1162
    %v1179 = vadd.f32 %v1131, %v1163
    %v1180 = vadd.f32 %v1132, %v1164
    %v1181 = vadd.f32 %v1133, %v1165
    %v1182 = vadd.f32 %v1134, %v1166
    %v1183 = vadd.f32 %v1135, %v1167
    %v1184 = vadd.f32 %v1136, %v1168
    %v1185 = vadd.f32 %v1137, %v1169
    %v1186 = vadd.f32 %v1138, %v1170
    %v1187 = vadd.f32 %v1139, %v1171
    %v1188 = vld [vmem:[#allocation3 + $0x5] sm:$0xff]
    %v1189 = vld [vmem:[#allocation3 + $0xd] sm:$0xff]
    %v1190 = vld [vmem:[#allocation3 + $0x1d] sm:$0xff]
    %v1191 = vld [vmem:[#allocation3 + $0x25] sm:$0xff]
    %v1192 = vld [vmem:[#allocation3 + $0x35] sm:$0xff]
    %v1193 = vld [vmem:[#allocation3 + $0x3d] sm:$0xff]
    %v1194 = vld [vmem:[#allocation3 + $0x4d] sm:$0xff]
    %v1195 = vld [vmem:[#allocation3 + $0x55] sm:$0xff]
    %v1196 = vld [vmem:[#allocation3 + $0x65] sm:$0xff]
    %v1197 = vld [vmem:[#allocation3 + $0x6d] sm:$0xff]
    %v1198 = vld [vmem:[#allocation3 + $0x7d] sm:$0xff]
    %v1199 = vld [vmem:[#allocation3 + $0x85] sm:$0xff]
    %v1200 = vld [vmem:[#allocation3 + $0x95] sm:$0xff]
    %v1201 = vld [vmem:[#allocation3 + $0x9d] sm:$0xff]
    %v1202 = vld [vmem:[#allocation3 + $0xad] sm:$0xff]
    %v1203 = vld [vmem:[#allocation3 + $0xb5] sm:$0xff]
    %v1204 = vmul.f32 %v1188, 0.14251846
    %v1205 = vmul.f32 %v1189, 0.14251846
    %v1206 = vmul.f32 %v1190, 0.14251846
    %v1207 = vmul.f32 %v1191, 0.14251846
    %v1208 = vmul.f32 %v1192, 0.14251846
    %v1209 = vmul.f32 %v1193, 0.14251846
    %v1210 = vmul.f32 %v1194, 0.14251846
    %v1211 = vmul.f32 %v1195, 0.14251846
    %v1212 = vmul.f32 %v1196, 0.14251846
    %v1213 = vmul.f32 %v1197, 0.14251846
    %v1214 = vmul.f32 %v1198, 0.14251846
    %v1215 = vmul.f32 %v1199, 0.14251846
    %v1216 = vmul.f32 %v1200, 0.14251846
    %v1217 = vmul.f32 %v1201, 0.14251846
    %v1218 = vmul.f32 %v1202, 0.14251846
    %v1219 = vmul.f32 %v1203, 0.14251846
    %v1220 = vadd.f32 %v1172, %v1204
    %v1221 = vadd.f32 %v1173, %v1205
    %v1222 = vadd.f32 %v1174, %v1206
    %v1223 = vadd.f32 %v1175, %v1207
    %v1224 = vadd.f32 %v1176, %v1208
    %v1225 = vadd.f32 %v1177, %v1209
    %v1226 = vadd.f32 %v1178, %v1210
    %v1227 = vadd.f32 %v1179, %v1211
    %v1228 = vadd.f32 %v1180, %v1212
    %v1229 = vadd.f32 %v1181, %v1213
    %v1230 = vadd.f32 %v1182, %v1214
    %v1231 = vadd.f32 %v1183, %v1215
    %v1232 = vadd.f32 %v1184, %v1216
    %v1233 = vadd.f32 %v1185, %v1217
    %v1234 = vadd.f32 %v1186, %v1218
    %v1235 = vadd.f32 %v1187, %v1219
    %v1236 = vld [vmem:[#allocation3 + $0x6] sm:$0xff]
    %v1237 = vld [vmem:[#allocation3 + $0xe] sm:$0xff]
    %v1238 = vld [vmem:[#allocation3 + $0x1e] sm:$0xff]
    %v1239 = vld [vmem:[#allocation3 + $0x26] sm:$0xff]
    %v1240 = vld [vmem:[#allocation3 + $0x36] sm:$0xff]
    %v1241 = vld [vmem:[#allocation3 + $0x3e] sm:$0xff]
    %v1242 = vld [vmem:[#allocation3 + $0x4e] sm:$0xff]
    %v1243 = vld [vmem:[#allocation3 + $0x56] sm:$0xff]
    %v1244 = vld [vmem:[#allocation3 + $0x66] sm:$0xff]
    %v1245 = vld [vmem:[#allocation3 + $0x6e] sm:$0xff]
    %v1246 = vld [vmem:[#allocation3 + $0x7e] sm:$0xff]
    %v1247 = vld [vmem:[#allocation3 + $0x86] sm:$0xff]
    %v1248 = vld [vmem:[#allocation3 + $0x96] sm:$0xff]
    %v1249 = vld [vmem:[#allocation3 + $0x9e] sm:$0xff]
    %v1250 = vld [vmem:[#allocation3 + $0xae] sm:$0xff]
    %v1251 = vld [vmem:[#allocation3 + $0xb6] sm:$0xff]
    %v1252 = vmul.f32 %v1236, 0.12895603
    %v1253 = vmul.f32 %v1237, 0.12895603
    %v1254 = vmul.f32 %v1238, 0.12895603
    %v1255 = vmul.f32 %v1239, 0.12895603
    %v1256 = vmul.f32 %v1240, 0.12895603
    %v1257 = vmul.f32 %v1241, 0.12895603
    %v1258 = vmul.f32 %v1242, 0.12895603
    %v1259 = vmul.f32 %v1243, 0.12895603
    %v1260 = vmul.f32 %v1244, 0.12895603
    %v1261 = vmul.f32 %v1245, 0.12895603
    %v1262 = vmul.f32 %v1246, 0.12895603
    %v1263 = vmul.f32 %v1247, 0.12895603
    %v1264 = vmul.f32 %v1248, 0.12895603
    %v1265 = vmul.f32 %v1249, 0.12895603
    %v1266 = vmul.f32 %v1250, 0.12895603
    %v1267 = vmul.f32 %v1251, 0.12895603
    %v1268 = vadd.f32 %v1220, %v1252
    %v1269 = vadd.f32 %v1221, %v1253
    %v1270 = vadd.f32 %v1222, %v1254
    %v1271 = vadd.f32 %v1223, %v1255
    %v1272 = vadd.f32 %v1224, %v1256
    %v1273 = vadd.f32 %v1225, %v1257
    %v1274 = vadd.f32 %v1226, %v1258
    %v1275 = vadd.f32 %v1227, %v1259
    %v1276 = vadd.f32 %v1228, %v1260
    %v1277 = vadd.f32 %v1229, %v1261
    %v1278 = vadd.f32 %v1230, %v1262
    %v1279 = vadd.f32 %v1231, %v1263
    %v1280 = vadd.f32 %v1232, %v1264
    %v1281 = vadd.f32 %v1233, %v1265
    %v1282 = vadd.f32 %v1234, %v1266
    %v1283 = vadd.f32 %v1235, %v1267
    %1284 = vst.msk [vmem:[#allocation7] sm:$0xff] %vm938, %v1268
    %1285 = vst.msk [vmem:[#allocation7 + $0x8] sm:$0xff] %vm938, %v1269
    %1286 = vst.msk [vmem:[#allocation7 + $0x10] sm:$0xff] %vm938, %v1270
    %1287 = vst.msk [vmem:[#allocation7 + $0x18] sm:$0xff] %vm938, %v1271
    %1288 = vst.msk [vmem:[#allocation7 + $0x20] sm:$0xff] %vm938, %v1272
    %1289 = vst.msk [vmem:[#allocation7 + $0x28] sm:$0xff] %vm938, %v1273
    %1290 = vst.msk [vmem:[#allocation7 + $0x30] sm:$0xff] %vm938, %v1274
    %1291 = vst.msk [vmem:[#allocation7 + $0x38] sm:$0xff] %vm938, %v1275
    %1292 = vst.msk [vmem:[#allocation7 + $0x40] sm:$0xff] %vm938, %v1276
    %1293 = vst.msk [vmem:[#allocation7 + $0x48] sm:$0xff] %vm938, %v1277
    %1294 = vst.msk [vmem:[#allocation7 + $0x50] sm:$0xff] %vm938, %v1278
    %1295 = vst.msk [vmem:[#allocation7 + $0x58] sm:$0xff] %vm938, %v1279
    %1296 = vst.msk [vmem:[#allocation7 + $0x60] sm:$0xff] %vm938, %v1280
    %1297 = vst.msk [vmem:[#allocation7 + $0x68] sm:$0xff] %vm938, %v1281
    %1298 = vst.msk [vmem:[#allocation7 + $0x70] sm:$0xff] %vm938, %v1282
    %1299 = vst.msk [vmem:[#allocation7 + $0x78] sm:$0xff] %vm938, %v1283
    // Predicated region
    $region10: #{tpu_custom_call.1} parent=1 // pred_check
      _
    $region11: #{tpu_custom_call.1} parent=1 // pred_check_branch
      %1301 = sbr.rel (0) target = $region13
    $region12: #{tpu_custom_call.1} parent=1 // pred_region
      %s1303 = ssub.s32 2048, 2048
      %1304 = vsyncadd [#allocation6], %s1303
      %s1305 = sshll.u32 [#allocation7], 4
      %s1306 = int_to_ptr.vmem [resolvable:$true] %s1305
      %1311 = dma.vmem_to_hbm [thread:$0]  %s1306, 2048, %s1, [#allocation6], 128, 128, 8
    $region13: #{tpu_custom_call.1} parent=1 // pred_fallthru
      _
    // Predicated region
    $region14: #{tpu_custom_call.1} parent=1 // pred_check
      _
    $region15: #{tpu_custom_call.1} parent=1 // pred_check_branch
      %1313 = sbr.rel (0) target = $region17
    $region16: #{tpu_custom_call.1} parent=1 // pred_region
      %1314 = dma.done [#allocation6], 2048
    $region17: #{tpu_custom_call.1} parent=1 // pred_fallthru
      _
    %1315 = vsyncpa [#allocation5], 1
    %1316 = vsyncpa [#allocation6], 1

</llo_original>
